<compile_context>
chip_gen: v5e
topology: v5e:2x2
jax: 0.10.0
libtpu: 0.0.40
codegen_flags: <defaults>
</compile_context>

<pallas_src>
import jax
import jax.numpy as jnp
from jax.experimental import pallas as pl
from jax.experimental.pallas import tpu as pltpu

NUM_LAYERS = 3      # >= 2 as required by the module
EMB_DIM = 64
NUM_TASKS = 1
NUM_NODES = 32
NUM_GRAPHS = 4
GIN_EPS = 0.0

# lane-dense padded sizes
D_PAD = 128         # emb_dim padded to full lane width
T_PAD = 128         # task dim padded to full lane width
G_PAD = 8           # graphs padded to a full sublane group


# ---------------------------------------------------------------------------
# Fused Pallas kernel: GIN stack -> JK='last' -> global_add_pool -> linear -> clamp
# ---------------------------------------------------------------------------
def fused_gnn_kernel(ahat_ref, x_ref, w_ref, b_ref, p_ref, wp_ref, bp_ref, o_ref):
    ahat = ahat_ref[...]          # (N, N), loaded once and reused every layer
    h = x_ref[...]                # H stays in vregs for the whole forward pass

    # Static unroll over layers (residual=False, drop_ratio=0 in eval mode).
    for layer in range(NUM_LAYERS):
        # GIN aggregation with (1+eps)I folded into Ahat: z = Ahat @ H
        z = jnp.dot(ahat, h, preferred_element_type=jnp.float32)
        pre = jnp.dot(z, w_ref[layer], preferred_element_type=jnp.float32) + b_ref[layer]
        h = jnp.maximum(pre, 0.0)

    # JK == 'last' -> global_add_pool -> linear head (module order; fewest FLOPs here)
    hg = jnp.dot(p_ref[...], h, preferred_element_type=jnp.float32)          # (G, D)
    out = jnp.dot(hg, wp_ref[...], preferred_element_type=jnp.float32) + bp_ref[...]
    # eval-mode clamp(0, 50); lane-dense (G_PAD, T_PAD) store
    o_ref[...] = jnp.clip(out, 0.0, 50.0)


# ---------------------------------------------------------------------------
# Wrapper: pad to lane-dense shapes, single pallas_call, slice real outputs.
# ---------------------------------------------------------------------------
@jax.jit
def hierarchical_gnn_forward(x, adj, pool_mat, params):
    n, d = x.shape
    g = pool_mat.shape[0]
    t = params["w_pred"].shape[1]

    # Ahat = A + (1+eps) I  (layer-invariant -> computed once)
    ahat = adj + (1.0 + GIN_EPS) * jnp.eye(n, dtype=jnp.float32)

    # Zero-pad everything to lane-dense shapes (padding stays exactly zero through
    # the ReLU stack, so results in the real slice are unchanged).
    x_p = jnp.zeros((n, D_PAD), jnp.float32).at[:, :d].set(x)
    w_p = jnp.zeros((NUM_LAYERS, D_PAD, D_PAD), jnp.float32).at[:, :d, :d].set(
        jnp.stack(params["w"]))
    b_p = jnp.zeros((NUM_LAYERS, 1, D_PAD), jnp.float32).at[:, :, :d].set(
        jnp.stack(params["b"]))
    p_p = jnp.zeros((G_PAD, n), jnp.float32).at[:g, :].set(pool_mat)
    wp_p = jnp.zeros((D_PAD, T_PAD), jnp.float32).at[:d, :t].set(params["w_pred"])
    bp_p = jnp.zeros((1, T_PAD), jnp.float32).at[:, :t].set(params["b_pred"])

    out_padded = pl.pallas_call(
        fused_gnn_kernel,
        out_shape=jax.ShapeDtypeStruct((G_PAD, T_PAD), jnp.float32),
        grid=(1,),
        in_specs=[
            pl.BlockSpec((n, n), lambda i: (0, 0)),                          # Ahat
            pl.BlockSpec((n, D_PAD), lambda i: (0, 0)),                      # X (padded)
            pl.BlockSpec((NUM_LAYERS, D_PAD, D_PAD), lambda i: (0, 0, 0)),   # stacked W
            pl.BlockSpec((NUM_LAYERS, 1, D_PAD), lambda i: (0, 0, 0)),       # stacked b
            pl.BlockSpec((G_PAD, n), lambda i: (0, 0)),                      # pooling P
            pl.BlockSpec((D_PAD, T_PAD), lambda i: (0, 0)),                  # w_pred
            pl.BlockSpec((1, T_PAD), lambda i: (0, 0)),                      # b_pred
        ],
        out_specs=pl.BlockSpec((G_PAD, T_PAD), lambda i: (0, 0)),
        compiler_params=pltpu.CompilerParams(dimension_semantics=("arbitrary",)),
    )(ahat, x_p, w_p, b_p, p_p, wp_p, bp_p)

    return out_padded[:g, :t]


# ---------------------------------------------------------------------------
# Deterministic parameters / example inputs
# ---------------------------------------------------------------------------
def build_params(key):
    keys = jax.random.split(key, 2 * NUM_LAYERS + 2)
    ws, bs = [], []
    for layer in range(NUM_LAYERS):
        ws.append(0.1 * jax.random.normal(keys[2 * layer], (EMB_DIM, EMB_DIM), jnp.float32))
        bs.append(0.01 * jax.random.normal(keys[2 * layer + 1], (1, EMB_DIM), jnp.float32))
    w_pred = 0.1 * jax.random.normal(keys[-2], (EMB_DIM, NUM_TASKS), jnp.float32)
    b_pred = 0.01 * jax.random.normal(keys[-1], (1, NUM_TASKS), jnp.float32)
    return {"w": ws, "b": bs, "w_pred": w_pred, "b_pred": b_pred}


def build_batch(key):
    # node features (stand-in for AtomEncoder output), already emb_dim wide
    x = jax.random.normal(key, (NUM_NODES, EMB_DIM), jnp.float32)
    # batch assignment: equal-sized graphs
    batch = jnp.repeat(jnp.arange(NUM_GRAPHS), NUM_NODES // NUM_GRAPHS)
    # ring-ish adjacency restricted to each graph
    idx = jnp.arange(NUM_NODES)
    same_graph = batch[:, None] == batch[None, :]
    neighbor = jnp.abs(idx[:, None] - idx[None, :]) == 1
    adj = (same_graph & neighbor).astype(jnp.float32)
    # pooling matrix: P[g, i] = 1 if node i belongs to graph g
    pool_mat = (batch[None, :] == jnp.arange(NUM_GRAPHS)[:, None]).astype(jnp.float32)
    return x, adj, pool_mat


def reference_forward(x, adj, pool_mat, params):
    h = x
    for layer in range(NUM_LAYERS):
        z = (1.0 + GIN_EPS) * h + adj @ h
        h = jnp.maximum(z @ params["w"][layer] + params["b"][layer], 0.0)
    h_graph = pool_mat @ h
    return jnp.clip(h_graph @ params["w_pred"] + params["b_pred"], 0.0, 50.0)


if __name__ == "__main__":
    key = jax.random.PRNGKey(0)
    k_data, k_params = jax.random.split(key)
    x, adj, pool_mat = build_batch(k_data)
    params = build_params(k_params)

    out = hierarchical_gnn_forward(x, adj, pool_mat, params)
    out = jax.block_until_ready(out)

    ref = reference_forward(x, adj, pool_mat, params)
    assert out.shape == (NUM_GRAPHS, NUM_TASKS)
    assert jnp.allclose(out, ref, atol=1e-4, rtol=1e-4)

    print("KERNEL_OK")
</pallas_src>

<mosaic_0001>
module attributes {stable_mosaic.version = 11 : i64} {
  func.func @fused_gnn_kernel(%arg0: i32, %arg1: memref<32x32xf32, #tpu.memory_space<vmem>>, %arg2: memref<32x128xf32, #tpu.memory_space<vmem>>, %arg3: memref<3x128x128xf32, #tpu.memory_space<vmem>>, %arg4: memref<3x1x128xf32, #tpu.memory_space<vmem>>, %arg5: memref<8x32xf32, #tpu.memory_space<vmem>>, %arg6: memref<128x128xf32, #tpu.memory_space<vmem>>, %arg7: memref<1x128xf32, #tpu.memory_space<vmem>>, %arg8: memref<8x128xf32, #tpu.memory_space<vmem>>) attributes {dimension_semantics = [#tpu.dimension_semantics<arbitrary>], iteration_bounds = array<i64: 1>, scalar_prefetch = 0 : i64, scratch_operands = 0 : i64, tpu.core_type = #tpu.core_type<tc>, window_params = [{pipeline_mode = #tpu.pipeline_mode<synchronous>, transform_indices = @transform_0, window_bounds = array<i64: 32, 32>}, {pipeline_mode = #tpu.pipeline_mode<synchronous>, transform_indices = @transform_1, window_bounds = array<i64: 32, 128>}, {pipeline_mode = #tpu.pipeline_mode<synchronous>, transform_indices = @transform_2, window_bounds = array<i64: 3, 128, 128>}, {pipeline_mode = #tpu.pipeline_mode<synchronous>, transform_indices = @transform_3, window_bounds = array<i64: 3, 1, 128>}, {pipeline_mode = #tpu.pipeline_mode<synchronous>, transform_indices = @transform_4, window_bounds = array<i64: 8, 32>}, {pipeline_mode = #tpu.pipeline_mode<synchronous>, transform_indices = @transform_5, window_bounds = array<i64: 128, 128>}, {pipeline_mode = #tpu.pipeline_mode<synchronous>, transform_indices = @transform_6, window_bounds = array<i64: 1, 128>}, {pipeline_mode = #tpu.pipeline_mode<synchronous>, transform_indices = @transform_7, window_bounds = array<i64: 8, 128>}]} {
    %c0 = arith.constant 0 : index
    %c0_0 = arith.constant 0 : index
    %0 = vector.load %arg1[%c0, %c0_0] : memref<32x32xf32, #tpu.memory_space<vmem>>, vector<32x32xf32>
    %c0_1 = arith.constant 0 : index
    %c0_2 = arith.constant 0 : index
    %1 = vector.load %arg2[%c0_1, %c0_2] : memref<32x128xf32, #tpu.memory_space<vmem>>, vector<32x128xf32>
    %cst = arith.constant dense<0.000000e+00> : vector<32x128xf32>
    %2 = tpu.matmul %0, %1, %cst {dimension_numbers = #tpu.dot_dimension_numbers<[1], [0], [0], [1], [0, 0, 1, 1], [], []>} : vector<32x32xf32>, vector<32x128xf32>, vector<32x128xf32> -> vector<32x128xf32>
    %c0_3 = arith.constant 0 : index
    %c0_4 = arith.constant 0 : index
    %c0_5 = arith.constant 0 : index
    %3 = vector.load %arg3[%c0_3, %c0_4, %c0_5] : memref<3x128x128xf32, #tpu.memory_space<vmem>>, vector<1x128x128xf32>
    %4 = vector.shape_cast %3 : vector<1x128x128xf32> to vector<128x128xf32>
    %cst_6 = arith.constant dense<0.000000e+00> : vector<32x128xf32>
    %5 = tpu.matmul %2, %4, %cst_6 {dimension_numbers = #tpu.dot_dimension_numbers<[1], [0], [0], [1], [0, 0, 1, 1], [], []>} : vector<32x128xf32>, vector<128x128xf32>, vector<32x128xf32> -> vector<32x128xf32>
    %c0_7 = arith.constant 0 : index
    %c0_8 = arith.constant 0 : index
    %c0_9 = arith.constant 0 : index
    %6 = vector.load %arg4[%c0_7, %c0_8, %c0_9] : memref<3x1x128xf32, #tpu.memory_space<vmem>>, vector<1x1x128xf32>
    %7 = vector.shape_cast %6 : vector<1x1x128xf32> to vector<1x128xf32>
    %8 = vector.broadcast %7 : vector<1x128xf32> to vector<32x128xf32>
    %9 = arith.addf %5, %8 : vector<32x128xf32>
    %cst_10 = arith.constant 0.000000e+00 : f32
    %10 = vector.broadcast %cst_10 : f32 to vector<32x128xf32>
    %11 = arith.maximumf %9, %10 : vector<32x128xf32>
    %cst_11 = arith.constant dense<0.000000e+00> : vector<32x128xf32>
    %12 = tpu.matmul %0, %11, %cst_11 {dimension_numbers = #tpu.dot_dimension_numbers<[1], [0], [0], [1], [0, 0, 1, 1], [], []>} : vector<32x32xf32>, vector<32x128xf32>, vector<32x128xf32> -> vector<32x128xf32>
    %c1 = arith.constant 1 : index
    %c0_12 = arith.constant 0 : index
    %c0_13 = arith.constant 0 : index
    %13 = vector.load %arg3[%c1, %c0_12, %c0_13] : memref<3x128x128xf32, #tpu.memory_space<vmem>>, vector<1x128x128xf32>
    %14 = vector.shape_cast %13 : vector<1x128x128xf32> to vector<128x128xf32>
    %cst_14 = arith.constant dense<0.000000e+00> : vector<32x128xf32>
    %15 = tpu.matmul %12, %14, %cst_14 {dimension_numbers = #tpu.dot_dimension_numbers<[1], [0], [0], [1], [0, 0, 1, 1], [], []>} : vector<32x128xf32>, vector<128x128xf32>, vector<32x128xf32> -> vector<32x128xf32>
    %c1_15 = arith.constant 1 : index
    %c0_16 = arith.constant 0 : index
    %c0_17 = arith.constant 0 : index
    %16 = vector.load %arg4[%c1_15, %c0_16, %c0_17] : memref<3x1x128xf32, #tpu.memory_space<vmem>>, vector<1x1x128xf32>
    %17 = vector.shape_cast %16 : vector<1x1x128xf32> to vector<1x128xf32>
    %18 = vector.broadcast %17 : vector<1x128xf32> to vector<32x128xf32>
    %19 = arith.addf %15, %18 : vector<32x128xf32>
    %cst_18 = arith.constant 0.000000e+00 : f32
    %20 = vector.broadcast %cst_18 : f32 to vector<32x128xf32>
    %21 = arith.maximumf %19, %20 : vector<32x128xf32>
    %cst_19 = arith.constant dense<0.000000e+00> : vector<32x128xf32>
    %22 = tpu.matmul %0, %21, %cst_19 {dimension_numbers = #tpu.dot_dimension_numbers<[1], [0], [0], [1], [0, 0, 1, 1], [], []>} : vector<32x32xf32>, vector<32x128xf32>, vector<32x128xf32> -> vector<32x128xf32>
    %c2 = arith.constant 2 : index
    %c0_20 = arith.constant 0 : index
    %c0_21 = arith.constant 0 : index
    %23 = vector.load %arg3[%c2, %c0_20, %c0_21] : memref<3x128x128xf32, #tpu.memory_space<vmem>>, vector<1x128x128xf32>
    %24 = vector.shape_cast %23 : vector<1x128x128xf32> to vector<128x128xf32>
    %cst_22 = arith.constant dense<0.000000e+00> : vector<32x128xf32>
    %25 = tpu.matmul %22, %24, %cst_22 {dimension_numbers = #tpu.dot_dimension_numbers<[1], [0], [0], [1], [0, 0, 1, 1], [], []>} : vector<32x128xf32>, vector<128x128xf32>, vector<32x128xf32> -> vector<32x128xf32>
    %c2_23 = arith.constant 2 : index
    %c0_24 = arith.constant 0 : index
    %c0_25 = arith.constant 0 : index
    %26 = vector.load %arg4[%c2_23, %c0_24, %c0_25] : memref<3x1x128xf32, #tpu.memory_space<vmem>>, vector<1x1x128xf32>
    %27 = vector.shape_cast %26 : vector<1x1x128xf32> to vector<1x128xf32>
    %28 = vector.broadcast %27 : vector<1x128xf32> to vector<32x128xf32>
    %29 = arith.addf %25, %28 : vector<32x128xf32>
    %cst_26 = arith.constant 0.000000e+00 : f32
    %30 = vector.broadcast %cst_26 : f32 to vector<32x128xf32>
    %31 = arith.maximumf %29, %30 : vector<32x128xf32>
    %c0_27 = arith.constant 0 : index
    %c0_28 = arith.constant 0 : index
    %32 = vector.load %arg5[%c0_27, %c0_28] : memref<8x32xf32, #tpu.memory_space<vmem>>, vector<8x32xf32>
    %cst_29 = arith.constant dense<0.000000e+00> : vector<8x128xf32>
    %33 = tpu.matmul %32, %31, %cst_29 {dimension_numbers = #tpu.dot_dimension_numbers<[1], [0], [0], [1], [0, 0, 1, 1], [], []>} : vector<8x32xf32>, vector<32x128xf32>, vector<8x128xf32> -> vector<8x128xf32>
    %c0_30 = arith.constant 0 : index
    %c0_31 = arith.constant 0 : index
    %34 = vector.load %arg6[%c0_30, %c0_31] : memref<128x128xf32, #tpu.memory_space<vmem>>, vector<128x128xf32>
    %cst_32 = arith.constant dense<0.000000e+00> : vector<8x128xf32>
    %35 = tpu.matmul %33, %34, %cst_32 {dimension_numbers = #tpu.dot_dimension_numbers<[1], [0], [0], [1], [0, 0, 1, 1], [], []>} : vector<8x128xf32>, vector<128x128xf32>, vector<8x128xf32> -> vector<8x128xf32>
    %c0_33 = arith.constant 0 : index
    %c0_34 = arith.constant 0 : index
    %36 = vector.load %arg7[%c0_33, %c0_34] : memref<1x128xf32, #tpu.memory_space<vmem>>, vector<1x128xf32>
    %37 = vector.broadcast %36 : vector<1x128xf32> to vector<8x128xf32>
    %38 = arith.addf %35, %37 : vector<8x128xf32>
    %cst_35 = arith.constant 0.000000e+00 : f32
    %cst_36 = arith.constant 5.000000e+01 : f32
    %39 = vector.broadcast %cst_35 : f32 to vector<8x128xf32>
    %40 = arith.maximumf %39, %38 : vector<8x128xf32>
    %41 = vector.broadcast %cst_36 : f32 to vector<8x128xf32>
    %42 = arith.minimumf %41, %40 : vector<8x128xf32>
    %c0_37 = arith.constant 0 : index
    %c0_38 = arith.constant 0 : index
    %43 = vector.load %arg8[%c0_37, %c0_38] : memref<8x128xf32, #tpu.memory_space<vmem>>, vector<8x128xf32>
    tpu.vector_store %arg8[%c0_37, %c0_38], %42 {strides = array<i32>} : memref<8x128xf32, #tpu.memory_space<vmem>>, vector<8x128xf32>,
    return
  }
  func.func @transform_0(%arg0: i32) -> (i32, i32) {
    %c0_i32 = arith.constant 0 : i32
    %c0_i32_0 = arith.constant 0 : i32
    %c0_i32_1 = arith.constant 0 : i32
    return %c0_i32, %c0_i32_0 : i32, i32
  }
  func.func @transform_1(%arg0: i32) -> (i32, i32) {
    %c0_i32 = arith.constant 0 : i32
    %c0_i32_0 = arith.constant 0 : i32
    %c0_i32_1 = arith.constant 0 : i32
    return %c0_i32, %c0_i32_0 : i32, i32
  }
  func.func @transform_2(%arg0: i32) -> (i32, i32, i32) {
    %c0_i32 = arith.constant 0 : i32
    %c0_i32_0 = arith.constant 0 : i32
    %c0_i32_1 = arith.constant 0 : i32
    %c0_i32_2 = arith.constant 0 : i32
    return %c0_i32, %c0_i32_0, %c0_i32_1 : i32, i32, i32
  }
  func.func @transform_3(%arg0: i32) -> (i32, i32, i32) {
    %c0_i32 = arith.constant 0 : i32
    %c0_i32_0 = arith.constant 0 : i32
    %c0_i32_1 = arith.constant 0 : i32
    %c0_i32_2 = arith.constant 0 : i32
    return %c0_i32, %c0_i32_0, %c0_i32_1 : i32, i32, i32
  }
  func.func @transform_4(%arg0: i32) -> (i32, i32) {
    %c0_i32 = arith.constant 0 : i32
    %c0_i32_0 = arith.constant 0 : i32
    %c0_i32_1 = arith.constant 0 : i32
    return %c0_i32, %c0_i32_0 : i32, i32
  }
  func.func @transform_5(%arg0: i32) -> (i32, i32) {
    %c0_i32 = arith.constant 0 : i32
    %c0_i32_0 = arith.constant 0 : i32
    %c0_i32_1 = arith.constant 0 : i32
    return %c0_i32, %c0_i32_0 : i32, i32
  }
  func.func @transform_6(%arg0: i32) -> (i32, i32) {
    %c0_i32 = arith.constant 0 : i32
    %c0_i32_0 = arith.constant 0 : i32
    %c0_i32_1 = arith.constant 0 : i32
    return %c0_i32, %c0_i32_0 : i32, i32
  }
  func.func @transform_7(%arg0: i32) -> (i32, i32) {
    %c0_i32 = arith.constant 0 : i32
    %c0_i32_0 = arith.constant 0 : i32
    %c0_i32_1 = arith.constant 0 : i32
    return %c0_i32, %c0_i32_0 : i32, i32
  }
}

</mosaic_0001>

<llo_original>
// kernel: hierarchical_gnn_forward.1
$region0: #{hierarchical_gnn_forward.1}
  #allocation0 [shape = 'u32[]', space=smem, size = 0x4, offset = 0x4, fixed_abs, tag = 'smem constant byte address 0x4 - core index']
  #allocation1 [shape = 'u32[72,128]{1,0:T(1,128)}', space=vmem, size = 0x9000, scoped, tag = 'internal scratch']
  %s0 = inlined_call_operand.vmem [shape: f32[32,32], index: 0, kind: input, shape index: {}]
  %s1 = inlined_call_operand.vmem [shape: f32[32,128], index: 1, kind: input, shape index: {}]
  %s2 = inlined_call_operand.vmem [shape: f32[3,128,128], index: 2, kind: input, shape index: {}]
  %s3 = inlined_call_operand.vmem [shape: f32[3,1,128], index: 3, kind: input, shape index: {}]
  %s4 = inlined_call_operand.vmem [shape: f32[8,32], index: 4, kind: input, shape index: {}]
  %s5 = inlined_call_operand.vmem [shape: f32[128,128], index: 5, kind: input, shape index: {}]
  %s6 = inlined_call_operand.vmem [shape: f32[1,128], index: 6, kind: input, shape index: {}]
  %s7 = inlined_call_operand.vmem [shape: f32[8,128], index: 7, kind: output, shape index: {}]
  %s8 = sld [smem:[#allocation0]]
  $region38: #{hierarchical_gnn_forward.1} parent=0
    _
  %s10 = ssub.s32 1, %s8
  %s11 = scalar_select 0, %s10, %s8
  // Predicated region
  $region2: #{hierarchical_gnn_forward.1} parent=0 // pred_check
    _
  $region3: #{hierarchical_gnn_forward.1} parent=0 // pred_check_branch
    %13 = sbr.rel (0) target = $region5
  $region4: #{hierarchical_gnn_forward.1} parent=0 // pred_region
    _
  $region5: #{hierarchical_gnn_forward.1} parent=0 // pred_fallthru
    _
  // Predicated region
  $region6: #{hierarchical_gnn_forward.1} parent=0 // pred_check
    _
  $region7: #{hierarchical_gnn_forward.1} parent=0 // pred_check_branch
    %15 = sbr.rel (0) target = $region9
  $region8: #{hierarchical_gnn_forward.1} parent=0 // pred_region
    _
  $region9: #{hierarchical_gnn_forward.1} parent=0 // pred_fallthru
    _
  // Predicated region
  $region10: #{hierarchical_gnn_forward.1} parent=0 // pred_check
    _
  $region11: #{hierarchical_gnn_forward.1} parent=0 // pred_check_branch
    %17 = sbr.rel (0) target = $region13
  $region12: #{hierarchical_gnn_forward.1} parent=0 // pred_region
    _
  $region13: #{hierarchical_gnn_forward.1} parent=0 // pred_fallthru
    _
  // Predicated region
  $region14: #{hierarchical_gnn_forward.1} parent=0 // pred_check
    _
  $region15: #{hierarchical_gnn_forward.1} parent=0 // pred_check_branch
    %19 = sbr.rel (0) target = $region17
  $region16: #{hierarchical_gnn_forward.1} parent=0 // pred_region
    _
  $region17: #{hierarchical_gnn_forward.1} parent=0 // pred_fallthru
    _
  // Predicated region
  $region18: #{hierarchical_gnn_forward.1} parent=0 // pred_check
    _
  $region19: #{hierarchical_gnn_forward.1} parent=0 // pred_check_branch
    %21 = sbr.rel (0) target = $region21
  $region20: #{hierarchical_gnn_forward.1} parent=0 // pred_region
    _
  $region21: #{hierarchical_gnn_forward.1} parent=0 // pred_fallthru
    _
  // Predicated region
  $region22: #{hierarchical_gnn_forward.1} parent=0 // pred_check
    _
  $region23: #{hierarchical_gnn_forward.1} parent=0 // pred_check_branch
    %23 = sbr.rel (0) target = $region25
  $region24: #{hierarchical_gnn_forward.1} parent=0 // pred_region
    _
  $region25: #{hierarchical_gnn_forward.1} parent=0 // pred_fallthru
    _
  // Predicated region
  $region26: #{hierarchical_gnn_forward.1} parent=0 // pred_check
    _
  $region27: #{hierarchical_gnn_forward.1} parent=0 // pred_check_branch
    %25 = sbr.rel (0) target = $region29
  $region28: #{hierarchical_gnn_forward.1} parent=0 // pred_region
    _
  $region29: #{hierarchical_gnn_forward.1} parent=0 // pred_fallthru
    _
  %v26 = vld [vmem:[%s0] sm:$0xff]
  %v27 = vld [vmem:[%s0 + $0x8] sm:$0xff]
  %v28 = vld [vmem:[%s0 + $0x10] sm:$0xff]
  %v29 = vld [vmem:[%s0 + $0x18] sm:$0xff]
  %v30 = vld [vmem:[%s1] sm:$0xff]
  %v31 = vld [vmem:[%s1 + $0x8] sm:$0xff]
  %v32 = vld [vmem:[%s1 + $0x10] sm:$0xff]
  %v33 = vld [vmem:[%s1 + $0x18] sm:$0xff]
  %vm34 = vcmask 261120
  %v36 = vsel %vm34, %v26, 0
  %v39 = vsel %vm34, %v27, 0
  %v42 = vsel %vm34, %v28, 0
  %v45 = vsel %vm34, %v29, 0
  %47 = vmatpush.msra.mxu0 0.0
  %48 = vmatpush.msra.mxu0 0.0
  %49 = vmatpush.msra.mxu0 0.0
  %50 = vmatpush.msra.mxu0 0.0
  %51 = vmatpush.msra.mxu0 0.0
  %52 = vmatpush.msra.mxu0 0.0
  %53 = vmatpush.msra.mxu0 0.0
  %54 = vmatpush.msra.mxu0 0.0
  %55 = vmatpush.msra.mxu0 0.0
  %56 = vmatpush.msra.mxu0 0.0
  %57 = vmatpush.msra.mxu0 0.0
  %58 = vmatpush.msra.mxu0 0.0
  %59 = vmatpush.msra.mxu0 %v33
  %60 = vmatpush.msra.mxu0 %v32
  %61 = vmatpush.msra.mxu0 %v31
  %62 = vmatpush.msra.mxu0 %v30
  %63 = vmatmul.f32.gmra.mxu0 %v36
  %v64 = vpop.f32.mrf.mxu0
  %v65 = vadd.f32 0.0, %v64
  %66 = vmatmul.f32.gmra.mxu0 %v39
  %v67 = vpop.f32.mrf.mxu0
  %v68 = vadd.f32 0.0, %v67
  %69 = vmatmul.f32.gmra.mxu0 %v42
  %v70 = vpop.f32.mrf.mxu0
  %v71 = vadd.f32 0.0, %v70
  %72 = vmatmul.f32.gmra.mxu0 %v45
  %v73 = vpop.f32.mrf.mxu0
  %v74 = vadd.f32 0.0, %v73
  %75 = vdwg.mxu0
  %v76 = vld [vmem:[%s2] sm:$0xff]
  %v77 = vld [vmem:[%s2 + $0x8] sm:$0xff]
  %v78 = vld [vmem:[%s2 + $0x10] sm:$0xff]
  %v79 = vld [vmem:[%s2 + $0x18] sm:$0xff]
  %v80 = vld [vmem:[%s2 + $0x20] sm:$0xff]
  %v81 = vld [vmem:[%s2 + $0x28] sm:$0xff]
  %v82 = vld [vmem:[%s2 + $0x30] sm:$0xff]
  %v83 = vld [vmem:[%s2 + $0x38] sm:$0xff]
  %v84 = vld [vmem:[%s2 + $0x40] sm:$0xff]
  %v85 = vld [vmem:[%s2 + $0x48] sm:$0xff]
  %v86 = vld [vmem:[%s2 + $0x50] sm:$0xff]
  %v87 = vld [vmem:[%s2 + $0x58] sm:$0xff]
  %v88 = vld [vmem:[%s2 + $0x60] sm:$0xff]
  %v89 = vld [vmem:[%s2 + $0x68] sm:$0xff]
  %v90 = vld [vmem:[%s2 + $0x70] sm:$0xff]
  %v91 = vld [vmem:[%s2 + $0x78] sm:$0xff]
  %v92 = vld [vmem:[%s3] sm:$0x1]
  %v94 = vperm.slane %v92, 0
  %96 = vmatpush.msra.mxu0 %v91
  %97 = vmatpush.msra.mxu0 %v90
  %98 = vmatpush.msra.mxu0 %v89
  %99 = vmatpush.msra.mxu0 %v88
  %100 = vmatpush.msra.mxu0 %v87
  %101 = vmatpush.msra.mxu0 %v86
  %102 = vmatpush.msra.mxu0 %v85
  %103 = vmatpush.msra.mxu0 %v84
  %104 = vmatpush.msra.mxu0 %v83
  %105 = vmatpush.msra.mxu0 %v82
  %106 = vmatpush.msra.mxu0 %v81
  %107 = vmatpush.msra.mxu0 %v80
  %108 = vmatpush.msra.mxu0 %v79
  %109 = vmatpush.msra.mxu0 %v78
  %110 = vmatpush.msra.mxu0 %v77
  %111 = vmatpush.msra.mxu0 %v76
  %112 = vmatmul.f32.gmra.mxu0 %v65
  %v113 = vpop.f32.mrf.mxu0
  %v114 = vadd.f32 %v94, %v113
  %115 = vmatmul.f32.gmra.mxu0 %v68
  %v116 = vpop.f32.mrf.mxu0
  %v117 = vadd.f32 %v94, %v116
  %118 = vmatmul.f32.gmra.mxu0 %v71
  %v119 = vpop.f32.mrf.mxu0
  %v120 = vadd.f32 %v94, %v119
  %121 = vmatmul.f32.gmra.mxu0 %v74
  %v122 = vpop.f32.mrf.mxu0
  %v123 = vadd.f32 %v94, %v122
  %124 = vdwg.mxu0
  %v125 = vmax.f32 %v114, 0.0
  %v126 = vmax.f32 %v117, 0.0
  %v127 = vmax.f32 %v120, 0.0
  %v128 = vmax.f32 %v123, 0.0
  %129 = vmatpush.msra.mxu0 0.0
  %130 = vmatpush.msra.mxu0 0.0
  %131 = vmatpush.msra.mxu0 0.0
  %132 = vmatpush.msra.mxu0 0.0
  %133 = vmatpush.msra.mxu0 0.0
  %134 = vmatpush.msra.mxu0 0.0
  %135 = vmatpush.msra.mxu0 0.0
  %136 = vmatpush.msra.mxu0 0.0
  %137 = vmatpush.msra.mxu0 0.0
  %138 = vmatpush.msra.mxu0 0.0
  %139 = vmatpush.msra.mxu0 0.0
  %140 = vmatpush.msra.mxu0 0.0
  %141 = vmatpush.msra.mxu0 %v128
  %142 = vmatpush.msra.mxu0 %v127
  %143 = vmatpush.msra.mxu0 %v126
  %144 = vmatpush.msra.mxu0 %v125
  %145 = vmatmul.f32.gmra.mxu0 %v36
  %v146 = vpop.f32.mrf.mxu0
  %v147 = vadd.f32 0.0, %v146
  %148 = vmatmul.f32.gmra.mxu0 %v39
  %v149 = vpop.f32.mrf.mxu0
  %v150 = vadd.f32 0.0, %v149
  %151 = vmatmul.f32.gmra.mxu0 %v42
  %v152 = vpop.f32.mrf.mxu0
  %v153 = vadd.f32 0.0, %v152
  %154 = vmatmul.f32.gmra.mxu0 %v45
  %v155 = vpop.f32.mrf.mxu0
  %v156 = vadd.f32 0.0, %v155
  %157 = vdwg.mxu0
  %s158 = scalar_lea.vmem %s2, 128
  %v159 = vld [vmem:[%s158] sm:$0xff]
  %v160 = vld [vmem:[%s158 + $0x8] sm:$0xff]
  %v161 = vld [vmem:[%s158 + $0x10] sm:$0xff]
  %v162 = vld [vmem:[%s158 + $0x18] sm:$0xff]
  %v163 = vld [vmem:[%s158 + $0x20] sm:$0xff]
  %v164 = vld [vmem:[%s158 + $0x28] sm:$0xff]
  %v165 = vld [vmem:[%s158 + $0x30] sm:$0xff]
  %v166 = vld [vmem:[%s158 + $0x38] sm:$0xff]
  %v167 = vld [vmem:[%s158 + $0x40] sm:$0xff]
  %v168 = vld [vmem:[%s158 + $0x48] sm:$0xff]
  %v169 = vld [vmem:[%s158 + $0x50] sm:$0xff]
  %v170 = vld [vmem:[%s158 + $0x58] sm:$0xff]
  %v171 = vld [vmem:[%s158 + $0x60] sm:$0xff]
  %v172 = vld [vmem:[%s158 + $0x68] sm:$0xff]
  %v173 = vld [vmem:[%s158 + $0x70] sm:$0xff]
  %v174 = vld [vmem:[%s158 + $0x78] sm:$0xff]
  %s175 = scalar_lea.vmem %s3, 1
  %v176 = vld [vmem:[%s175] sm:$0x1]
  %v178 = vperm.slane %v176, 0
  %180 = vmatpush.msra.mxu0 %v174
  %181 = vmatpush.msra.mxu0 %v173
  %182 = vmatpush.msra.mxu0 %v172
  %183 = vmatpush.msra.mxu0 %v171
  %184 = vmatpush.msra.mxu0 %v170
  %185 = vmatpush.msra.mxu0 %v169
  %186 = vmatpush.msra.mxu0 %v168
  %187 = vmatpush.msra.mxu0 %v167
  %188 = vmatpush.msra.mxu0 %v166
  %189 = vmatpush.msra.mxu0 %v165
  %190 = vmatpush.msra.mxu0 %v164
  %191 = vmatpush.msra.mxu0 %v163
  %192 = vmatpush.msra.mxu0 %v162
  %193 = vmatpush.msra.mxu0 %v161
  %194 = vmatpush.msra.mxu0 %v160
  %195 = vmatpush.msra.mxu0 %v159
  %196 = vmatmul.f32.gmra.mxu0 %v147
  %v197 = vpop.f32.mrf.mxu0
  %v198 = vadd.f32 %v178, %v197
  %199 = vmatmul.f32.gmra.mxu0 %v150
  %v200 = vpop.f32.mrf.mxu0
  %v201 = vadd.f32 %v178, %v200
  %202 = vmatmul.f32.gmra.mxu0 %v153
  %v203 = vpop.f32.mrf.mxu0
  %v204 = vadd.f32 %v178, %v203
  %205 = vmatmul.f32.gmra.mxu0 %v156
  %v206 = vpop.f32.mrf.mxu0
  %v207 = vadd.f32 %v178, %v206
  %208 = vdwg.mxu0
  %v209 = vmax.f32 %v198, 0.0
  %v210 = vmax.f32 %v201, 0.0
  %v211 = vmax.f32 %v204, 0.0
  %v212 = vmax.f32 %v207, 0.0
  %213 = vmatpush.msra.mxu0 0.0
  %214 = vmatpush.msra.mxu0 0.0
  %215 = vmatpush.msra.mxu0 0.0
  %216 = vmatpush.msra.mxu0 0.0
  %217 = vmatpush.msra.mxu0 0.0
  %218 = vmatpush.msra.mxu0 0.0
  %219 = vmatpush.msra.mxu0 0.0
  %220 = vmatpush.msra.mxu0 0.0
  %221 = vmatpush.msra.mxu0 0.0
  %222 = vmatpush.msra.mxu0 0.0
  %223 = vmatpush.msra.mxu0 0.0
  %224 = vmatpush.msra.mxu0 0.0
  %225 = vmatpush.msra.mxu0 %v212
  %226 = vmatpush.msra.mxu0 %v211
  %227 = vmatpush.msra.mxu0 %v210
  %228 = vmatpush.msra.mxu0 %v209
  %229 = vmatmul.f32.gmra.mxu0 %v36
  %v230 = vpop.f32.mrf.mxu0
  %v231 = vadd.f32 0.0, %v230
  %232 = vmatmul.f32.gmra.mxu0 %v39
  %v233 = vpop.f32.mrf.mxu0
  %v234 = vadd.f32 0.0, %v233
  %235 = vmatmul.f32.gmra.mxu0 %v42
  %v236 = vpop.f32.mrf.mxu0
  %v237 = vadd.f32 0.0, %v236
  %238 = vmatmul.f32.gmra.mxu0 %v45
  %v239 = vpop.f32.mrf.mxu0
  %v240 = vadd.f32 0.0, %v239
  %241 = vdwg.mxu0
  %s242 = scalar_lea.vmem %s2, 256
  %v243 = vld [vmem:[%s242] sm:$0xff]
  %v244 = vld [vmem:[%s242 + $0x8] sm:$0xff]
  %v245 = vld [vmem:[%s242 + $0x10] sm:$0xff]
  %v246 = vld [vmem:[%s242 + $0x18] sm:$0xff]
  %v247 = vld [vmem:[%s242 + $0x20] sm:$0xff]
  %v248 = vld [vmem:[%s242 + $0x28] sm:$0xff]
  %v249 = vld [vmem:[%s242 + $0x30] sm:$0xff]
  %v250 = vld [vmem:[%s242 + $0x38] sm:$0xff]
  %v251 = vld [vmem:[%s242 + $0x40] sm:$0xff]
  %v252 = vld [vmem:[%s242 + $0x48] sm:$0xff]
  %v253 = vld [vmem:[%s242 + $0x50] sm:$0xff]
  %v254 = vld [vmem:[%s242 + $0x58] sm:$0xff]
  %v255 = vld [vmem:[%s242 + $0x60] sm:$0xff]
  %v256 = vld [vmem:[%s242 + $0x68] sm:$0xff]
  %v257 = vld [vmem:[%s242 + $0x70] sm:$0xff]
  %v258 = vld [vmem:[%s242 + $0x78] sm:$0xff]
  %s259 = scalar_lea.vmem %s3, 2
  %v260 = vld [vmem:[%s259] sm:$0x1]
  %v262 = vperm.slane %v260, 0
  %264 = vmatpush.msra.mxu0 %v258
  %265 = vmatpush.msra.mxu0 %v257
  %266 = vmatpush.msra.mxu0 %v256
  %267 = vmatpush.msra.mxu0 %v255
  %268 = vmatpush.msra.mxu0 %v254
  %269 = vmatpush.msra.mxu0 %v253
  %270 = vmatpush.msra.mxu0 %v252
  %271 = vmatpush.msra.mxu0 %v251
  %272 = vmatpush.msra.mxu0 %v250
  %273 = vmatpush.msra.mxu0 %v249
  %274 = vmatpush.msra.mxu0 %v248
  %275 = vmatpush.msra.mxu0 %v247
  %276 = vmatpush.msra.mxu0 %v246
  %277 = vmatpush.msra.mxu0 %v245
  %278 = vmatpush.msra.mxu0 %v244
  %279 = vmatpush.msra.mxu0 %v243
  %280 = vmatmul.f32.gmra.mxu0 %v231
  %v281 = vpop.f32.mrf.mxu0
  %v282 = vadd.f32 %v262, %v281
  %283 = vmatmul.f32.gmra.mxu0 %v234
  %v284 = vpop.f32.mrf.mxu0
  %v285 = vadd.f32 %v262, %v284
  %286 = vmatmul.f32.gmra.mxu0 %v237
  %v287 = vpop.f32.mrf.mxu0
  %v288 = vadd.f32 %v262, %v287
  %289 = vmatmul.f32.gmra.mxu0 %v240
  %v290 = vpop.f32.mrf.mxu0
  %v291 = vadd.f32 %v262, %v290
  %292 = vdwg.mxu0
  %v293 = vmax.f32 %v282, 0.0
  %v294 = vmax.f32 %v285, 0.0
  %v295 = vmax.f32 %v288, 0.0
  %v296 = vmax.f32 %v291, 0.0
  %v297 = vld [vmem:[%s4] sm:$0xff]
  %v299 = vsel %vm34, %v297, 0
  %301 = vmatpush.msra.mxu0 0.0
  %302 = vmatpush.msra.mxu0 0.0
  %303 = vmatpush.msra.mxu0 0.0
  %304 = vmatpush.msra.mxu0 0.0
  %305 = vmatpush.msra.mxu0 0.0
  %306 = vmatpush.msra.mxu0 0.0
  %307 = vmatpush.msra.mxu0 0.0
  %308 = vmatpush.msra.mxu0 0.0
  %309 = vmatpush.msra.mxu0 0.0
  %310 = vmatpush.msra.mxu0 0.0
  %311 = vmatpush.msra.mxu0 0.0
  %312 = vmatpush.msra.mxu0 0.0
  %313 = vmatpush.msra.mxu0 %v296
  %314 = vmatpush.msra.mxu0 %v295
  %315 = vmatpush.msra.mxu0 %v294
  %316 = vmatpush.msra.mxu0 %v293
  %317 = vmatmul.f32.gmra.mxu0 %v299
  %v318 = vpop.f32.mrf.mxu0
  %v319 = vadd.f32 0.0, %v318
  %320 = vdwg.mxu0
  %v321 = vld [vmem:[%s5] sm:$0xff]
  %v322 = vld [vmem:[%s5 + $0x8] sm:$0xff]
  %v323 = vld [vmem:[%s5 + $0x10] sm:$0xff]
  %v324 = vld [vmem:[%s5 + $0x18] sm:$0xff]
  %v325 = vld [vmem:[%s5 + $0x20] sm:$0xff]
  %v326 = vld [vmem:[%s5 + $0x28] sm:$0xff]
  %v327 = vld [vmem:[%s5 + $0x30] sm:$0xff]
  %v328 = vld [vmem:[%s5 + $0x38] sm:$0xff]
  %v329 = vld [vmem:[%s5 + $0x40] sm:$0xff]
  %v330 = vld [vmem:[%s5 + $0x48] sm:$0xff]
  %v331 = vld [vmem:[%s5 + $0x50] sm:$0xff]
  %v332 = vld [vmem:[%s5 + $0x58] sm:$0xff]
  %v333 = vld [vmem:[%s5 + $0x60] sm:$0xff]
  %v334 = vld [vmem:[%s5 + $0x68] sm:$0xff]
  %v335 = vld [vmem:[%s5 + $0x70] sm:$0xff]
  %v336 = vld [vmem:[%s5 + $0x78] sm:$0xff]
  %v337 = vld [vmem:[%s6] sm:$0x1]
  %v339 = vperm.slane %v337, 0
  %341 = vmatpush.msra.mxu0 %v336
  %342 = vmatpush.msra.mxu0 %v335
  %343 = vmatpush.msra.mxu0 %v334
  %344 = vmatpush.msra.mxu0 %v333
  %345 = vmatpush.msra.mxu0 %v332
  %346 = vmatpush.msra.mxu0 %v331
  %347 = vmatpush.msra.mxu0 %v330
  %348 = vmatpush.msra.mxu0 %v329
  %349 = vmatpush.msra.mxu0 %v328
  %350 = vmatpush.msra.mxu0 %v327
  %351 = vmatpush.msra.mxu0 %v326
  %352 = vmatpush.msra.mxu0 %v325
  %353 = vmatpush.msra.mxu0 %v324
  %354 = vmatpush.msra.mxu0 %v323
  %355 = vmatpush.msra.mxu0 %v322
  %356 = vmatpush.msra.mxu0 %v321
  %357 = vmatmul.f32.gmra.mxu0 %v319
  %v358 = vpop.f32.mrf.mxu0
  %v359 = vadd.f32 %v339, %v358
  %360 = vdwg.mxu0
  %v361 = vmax.f32 %v359, 0.0
  %v362 = vmin.f32 %v361, 50.0
  %363 = vst [vmem:[%s7] sm:$0xff] %v362
  // Predicated region
  $region30: #{hierarchical_gnn_forward.1} parent=0 // pred_check
    _
  $region31: #{hierarchical_gnn_forward.1} parent=0 // pred_check_branch
    %365 = sbr.rel (0) target = $region33
  $region32: #{hierarchical_gnn_forward.1} parent=0 // pred_region
    _
  $region33: #{hierarchical_gnn_forward.1} parent=0 // pred_fallthru
    _
  // Predicated region
  $region34: #{hierarchical_gnn_forward.1} parent=0 // pred_check
    _
  $region35: #{hierarchical_gnn_forward.1} parent=0 // pred_check_branch
    %367 = sbr.rel (0) target = $region37
  $region36: #{hierarchical_gnn_forward.1} parent=0 // pred_region
    _
  $region37: #{hierarchical_gnn_forward.1} parent=0 // pred_fallthru
    _

</llo_original>
